<compile_context>
chip_gen: v7x
topology: tpu7x:2x2x1
jax: 0.10.0
libtpu: 0.0.40
codegen_flags: <defaults>
</compile_context>

<pallas_src>
import math

import jax
import jax.numpy as jnp
from jax.experimental import pallas as pl
from jax.experimental.pallas import tpu as pltpu


def _round_up(x, m):
    return (x + m - 1) // m * m


# ---------------------------------------------------------------------------
# Kernel bodies
# ---------------------------------------------------------------------------

def _make_kernel(compute_dtype, k_tiled):
    """Build the kernel body.

    compute_dtype: dtype of the prepared weight (both MXU operands).  The x
        tile is cast on the VMEM-resident tile if it differs (VPU work hidden
        under the DMA pipeline) -- no wrapper-side HBM cast pass.
    k_tiled: whether the grid has a third (D_in) reduction axis, in which case
        an f32 VMEM accumulator is carried across it.
    """
    if not k_tiled:
        def kernel(x_ref, w_ref, b_ref, o_ref):
            xv = x_ref[...]
            if xv.dtype != compute_dtype:
                xv = xv.astype(compute_dtype)
            acc = jnp.dot(xv, w_ref[...], preferred_element_type=jnp.float32)
            o_ref[...] = (acc + b_ref[...]).astype(o_ref.dtype)
        return kernel

    def kernel(x_ref, w_ref, b_ref, o_ref, acc_ref):
        k = pl.program_id(2)

        @pl.when(k == 0)
        def _():
            acc_ref[...] = jnp.zeros_like(acc_ref)

        xv = x_ref[...]
        if xv.dtype != compute_dtype:
            xv = xv.astype(compute_dtype)
        acc_ref[...] += jnp.dot(xv, w_ref[...],
                                preferred_element_type=jnp.float32)

        @pl.when(k == pl.num_programs(2) - 1)
        def _():
            o_ref[...] = (acc_ref[...] + b_ref[...]).astype(o_ref.dtype)

    return kernel


# ---------------------------------------------------------------------------
# Tile selection
# ---------------------------------------------------------------------------

def _choose_batch_tile(B, compute_is_sub32):
    # bf16 packs 16 rows per vreg sublane tile; f32 packs 8.
    sub = 16 if compute_is_sub32 else 8
    if B >= 512:
        return 256          # fills MXU M on v6e/v7x; two 128 passes on v5e
    if B > 128:
        return 128
    # Keep >= 2 grid steps when B allows so both v7x TensorCores get work.
    return min(_round_up(B, sub), max(sub, _round_up(pl.cdiv(B, 2), sub)))


def _choose_out_tile(D_out_pad):
    if D_out_pad <= 512:
        return D_out_pad
    for cand in (512, 256, 128):       # no 384: v6e MXU is 256-wide
        if D_out_pad % cand == 0:
            return cand
    return 128  # unreachable: D_out_pad is a multiple of 128


def _choose_k_tile(D_in, tn, w_itemsize, budget_bytes=8 << 20):
    # Weight block is double-buffered by the pipeline: 2 * kt * tn * itemsize.
    if 2 * D_in * tn * w_itemsize <= budget_bytes:
        return D_in
    max_kt = budget_bytes // (2 * tn * w_itemsize)
    kt = (max_kt // 512) * 512
    while kt >= 512:
        if D_in % kt == 0:
            return kt
        kt -= 512
    # TODO(synk): very large D_in not divisible by 512 would need zero-padded
    # K tiles; fall back to full K (caller may need to raise vmem_limit_bytes).
    return D_in


# ---------------------------------------------------------------------------
# Public API
# ---------------------------------------------------------------------------

def prepare_linear_eval_params(weight, bias, *, compute_dtype=None,
                               lane_multiple=128):
    """One-time packing of the nn.Linear parameters (amortize across steps).

    weight: (n_classes_eval, n_classes_encoder)  -- PyTorch layout
    bias  : (n_classes_eval,)
    Returns (w_t, bias2d, n_classes_eval):
      w_t    : (D_in, D_out_pad) MXU-native layout, optionally cast to
               compute_dtype (e.g. jnp.bfloat16), D_out padded to a lane
               multiple so stores stay unmasked and the MXU N dim is aligned.
      bias2d : (1, D_out_pad) float32.
    """
    D_out, D_in = weight.shape
    assert bias.shape == (D_out,)
    w_t = weight.T                                   # (D_in, D_out)
    if compute_dtype is not None:
        w_t = w_t.astype(compute_dtype)
    D_out_pad = _round_up(D_out, lane_multiple)
    b = bias.astype(jnp.float32)
    if D_out_pad != D_out:
        w_t = jnp.pad(w_t, ((0, 0), (0, D_out_pad - D_out)))
        b = jnp.pad(b, (0, D_out_pad - D_out))
    return w_t, b.reshape(1, D_out_pad), D_out


def linear_evaluation_head_apply(x, w_t, bias2d, n_classes_eval=None, *,
                                 tb=None, tn=None, kt=None,
                                 vmem_limit_bytes=None):
    """y = x @ W^T + b using params from prepare_linear_eval_params.

    x: (B, D_in) -> (B, n_classes_eval), dtype of x.
    """
    B, D_in = x.shape
    D_in_w, D_out_pad = w_t.shape
    assert D_in == D_in_w, "feature dims must match"
    assert bias2d.shape == (1, D_out_pad)
    if n_classes_eval is None:
        n_classes_eval = D_out_pad

    out_dtype = x.dtype
    w_itemsize = w_t.dtype.itemsize

    if tn is None:
        tn = _choose_out_tile(D_out_pad)
    if tb is None:
        tb = _choose_batch_tile(B, w_itemsize < 4)
    if kt is None:
        kt = _choose_k_tile(D_in, tn, w_itemsize)
    k_tiled = kt != D_in

    n_out = pl.cdiv(D_out_pad, tn)   # exact: tn divides D_out_pad
    n_b = pl.cdiv(B, tb)             # ragged last tile: masked partial writes

    kernel = _make_kernel(w_t.dtype, k_tiled)

    cost = pl.CostEstimate(
        flops=2 * B * D_in * D_out_pad,
        transcendentals=0,
        bytes_accessed=(n_out * x.size * x.dtype.itemsize   # x streamed per out tile
                        + w_t.size * w_itemsize             # each weight block once
                        + bias2d.size * 4
                        + B * D_out_pad * out_dtype.itemsize),
    )

    if k_tiled:
        grid = (n_out, n_b, pl.cdiv(D_in, kt))
        in_specs = [
            pl.BlockSpec((tb, kt), lambda j, i, k: (i, k)),   # x (streamed)
            pl.BlockSpec((kt, tn), lambda j, i, k: (k, j)),   # weight
            pl.BlockSpec((1, tn), lambda j, i, k: (0, j)),    # bias slice
        ]
        out_spec = pl.BlockSpec((tb, tn), lambda j, i, k: (i, j))
        scratch = [pltpu.VMEM((tb, tn), jnp.float32)]
        semantics = ("parallel", "parallel", "arbitrary")
    else:
        grid = (n_out, n_b)  # D_out outer -> weight block resident across
                             # the inner batch axis (DMA'd once per out tile)
        in_specs = [
            pl.BlockSpec((tb, D_in), lambda j, i: (i, 0)),    # x (streamed)
            pl.BlockSpec((D_in, tn), lambda j, i: (0, j)),    # weight (resident)
            pl.BlockSpec((1, tn), lambda j, i: (0, j)),       # bias slice
        ]
        out_spec = pl.BlockSpec((tb, tn), lambda j, i: (i, j))
        scratch = []
        semantics = ("parallel", "parallel")

    out = pl.pallas_call(
        kernel,
        out_shape=jax.ShapeDtypeStruct((B, D_out_pad), out_dtype),
        grid_spec=pltpu.PrefetchScalarGridSpec(
            num_scalar_prefetch=0,
            grid=grid,
            in_specs=in_specs,
            out_specs=out_spec,
            scratch_shapes=scratch,
        ),
        compiler_params=pltpu.CompilerParams(
            dimension_semantics=semantics,
            vmem_limit_bytes=vmem_limit_bytes,
        ),
        cost_estimate=cost,
    )(x, w_t, bias2d)

    if D_out_pad != n_classes_eval:
        out = out[:, :n_classes_eval]
    return out


def linear_evaluation_head(x, weight, bias, *, compute_dtype=None, **kwargs):
    """One-shot convenience wrapper (prepare + apply).

    In a training loop, call prepare_linear_eval_params once and reuse its
    outputs with linear_evaluation_head_apply so the transpose/cast/pad of the
    weight is amortized across steps.
    """
    w_t, b2, n_eval = prepare_linear_eval_params(weight, bias,
                                                 compute_dtype=compute_dtype)
    return linear_evaluation_head_apply(x, w_t, b2, n_eval, **kwargs)


if __name__ == "__main__":
    # Small shapes consistent with the module:
    #   config.n_classes_encoder = 128, config.n_classes_eval = 128
    B, D_IN, D_OUT = 32, 128, 128

    key = jax.random.PRNGKey(0)
    kx, kw, kb = jax.random.split(key, 3)

    x = jax.random.normal(kx, (B, D_IN), dtype=jnp.float32)
    # nn.init.normal_(self.fc.weight, std=0.01); bias keeps PyTorch default
    # uniform(-1/sqrt(D_IN), 1/sqrt(D_IN)) -- deterministic via PRNGKey(0).
    weight = 0.01 * jax.random.normal(kw, (D_OUT, D_IN), dtype=jnp.float32)
    bound = 1.0 / math.sqrt(D_IN)
    bias = jax.random.uniform(kb, (D_OUT,), dtype=jnp.float32,
                              minval=-bound, maxval=bound)

    y_ref = x @ weight.T + bias

    # Default path: exact f32 compute (matches nn.Linear numerics).
    w_t, b2, n_eval = prepare_linear_eval_params(weight, bias)   # one-time
    y = jax.block_until_ready(linear_evaluation_head_apply(x, w_t, b2, n_eval))
    assert y.shape == (B, D_OUT) and y.dtype == x.dtype
    assert jnp.allclose(y, y_ref, atol=1e-5, rtol=1e-5)

    # Explicit opt-in bf16 compute; odd batch (20) exercises the ragged,
    # masked last batch tile (no wrapper padding / slicing of the batch).
    w_t16, b216, n_eval16 = prepare_linear_eval_params(
        weight, bias, compute_dtype=jnp.bfloat16)                # one-time
    y16 = jax.block_until_ready(
        linear_evaluation_head_apply(x[:20], w_t16, b216, n_eval16))
    assert y16.shape == (20, D_OUT) and y16.dtype == x.dtype
    assert jnp.allclose(y16, y_ref[:20], atol=2e-2, rtol=2e-2)

    print("KERNEL_OK")
</pallas_src>

<mosaic_0001>
module attributes {stable_mosaic.version = 11 : i64} {
  func.func @kernel(%arg0: i32, %arg1: i32, %arg2: memref<16x128xf32, #tpu.memory_space<vmem>>, %arg3: memref<128x128xf32, #tpu.memory_space<vmem>>, %arg4: memref<1x128xf32, #tpu.memory_space<vmem>>, %arg5: memref<16x128xf32, #tpu.memory_space<vmem>>) attributes {dimension_semantics = [#tpu.dimension_semantics<parallel>, #tpu.dimension_semantics<parallel>], iteration_bounds = array<i64: 1, 2>, scalar_prefetch = 0 : i64, scratch_operands = 0 : i64, tpu.core_type = #tpu.core_type<tc>, window_params = [{transform_indices = @transform_0, window_bounds = array<i64: 16, 128>}, {transform_indices = @transform_1, window_bounds = array<i64: 128, 128>}, {transform_indices = @transform_2, window_bounds = array<i64: 1, 128>}, {transform_indices = @transform_3, window_bounds = array<i64: 16, 128>}]} {
    %c0 = arith.constant 0 : index
    %c0_0 = arith.constant 0 : index
    %0 = vector.load %arg2[%c0, %c0_0] : memref<16x128xf32, #tpu.memory_space<vmem>>, vector<16x128xf32>
    %c0_1 = arith.constant 0 : index
    %c0_2 = arith.constant 0 : index
    %1 = vector.load %arg3[%c0_1, %c0_2] : memref<128x128xf32, #tpu.memory_space<vmem>>, vector<128x128xf32>
    %cst = arith.constant dense<0.000000e+00> : vector<16x128xf32>
    %2 = tpu.matmul %0, %1, %cst {dimension_numbers = #tpu.dot_dimension_numbers<[1], [0], [0], [1], [0, 0, 1, 1], [], []>} : vector<16x128xf32>, vector<128x128xf32>, vector<16x128xf32> -> vector<16x128xf32>
    %c0_3 = arith.constant 0 : index
    %c0_4 = arith.constant 0 : index
    %3 = vector.load %arg4[%c0_3, %c0_4] : memref<1x128xf32, #tpu.memory_space<vmem>>, vector<1x128xf32>
    %4 = vector.broadcast %3 : vector<1x128xf32> to vector<16x128xf32>
    %5 = arith.addf %2, %4 : vector<16x128xf32>
    %c0_5 = arith.constant 0 : index
    %c0_6 = arith.constant 0 : index
    %6 = vector.load %arg5[%c0_5, %c0_6] : memref<16x128xf32, #tpu.memory_space<vmem>>, vector<16x128xf32>
    tpu.vector_store %arg5[%c0_5, %c0_6], %5 {strides = array<i32>} : memref<16x128xf32, #tpu.memory_space<vmem>>, vector<16x128xf32>,
    return
  }
  func.func @transform_0(%arg0: i32, %arg1: i32) -> (i32, i32) {
    %c0_i32 = arith.constant 0 : i32
    %c0_i32_0 = arith.constant 0 : i32
    return %arg1, %c0_i32 : i32, i32
  }
  func.func @transform_1(%arg0: i32, %arg1: i32) -> (i32, i32) {
    %c0_i32 = arith.constant 0 : i32
    %c0_i32_0 = arith.constant 0 : i32
    return %c0_i32, %arg0 : i32, i32
  }
  func.func @transform_2(%arg0: i32, %arg1: i32) -> (i32, i32) {
    %c0_i32 = arith.constant 0 : i32
    %c0_i32_0 = arith.constant 0 : i32
    return %c0_i32, %arg0 : i32, i32
  }
  func.func @transform_3(%arg0: i32, %arg1: i32) -> (i32, i32) {
    %c0_i32 = arith.constant 0 : i32
    return %arg1, %arg0 : i32, i32
  }
}

</mosaic_0001>

<llo_original>
// kernel: tpu_custom_call.1
$region0: #{tpu_custom_call.1}
  #allocation0 [shape = 'u32[]', space=smem, size = 0x4, offset = 0x4, fixed_abs, tag = 'smem constant byte address 0x4 - core index']
  #allocation1 [shape = 'u32[144,128]{1,0:T(1,128)}', space=vmem, size = 0x12000, scoped, tag = 'internal scratch']
  %s0 = inlined_call_operand.hbm [shape: f32[32,128], index: 0, kind: input, shape index: {}]
  %s1 = inlined_call_operand.hbm [shape: f32[128,128], index: 1, kind: input, shape index: {}]
  %s2 = inlined_call_operand.vmem [shape: f32[1,128], index: 2, kind: input, shape index: {}]
  %s3 = inlined_call_operand.hbm [shape: f32[32,128], index: 3, kind: output, shape index: {}]
  %s4 = sld [smem:[#allocation0]]
  $region53: #{tpu_custom_call.1} parent=0
    _
  %s6 = ssub.s32 1, %s4
  %s7 = scalar_select 0, %s6, %s4
  $region1: #{tpu_custom_call.1} parent=0
    #allocation2 [shape = 'u8[16384]{0}', space=vmem, size = 0x4000, scoped, tag = 'input window, operand 0']
    #allocation3 [shape = 's32[2]{0}', space=sflag, size = 0x8, scoped, tag = 'scoped memory for tpu_custom_call.1']
    #allocation4 [shape = 's32[2]{0}', space=sflag, size = 0x8, scoped, tag = 'scoped memory for tpu_custom_call.1']
    #allocation5 [shape = 'u8[65536]{0}', space=vmem, size = 0x10000, scoped, tag = 'input window, operand 1, single buffered']
    #allocation6 [shape = 's32[1]{0}', space=sflag, size = 0x4, scoped, tag = 'scoped memory for tpu_custom_call.1']
    #allocation7 [shape = 'u8[16384]{0}', space=vmem, size = 0x4000, scoped, tag = 'output window, operand 0']
    %8 = vsyncpa [#allocation3], 0
    %s9 = scalar_lea.sflag [#allocation3], 1
    %10 = vsyncpa %s9, 0
    %11 = vsyncpa [#allocation6], 0
    %12 = vsyncpa [#allocation4], 0
    %s13 = scalar_lea.sflag [#allocation4], 1
    %14 = vsyncpa %s13, 0
    loop: start=0, step=1, limit=4
    $region2: #{tpu_custom_call.1} parent=1 // loop_pre_header
      _
    $region3: #{tpu_custom_call.1} parent=1 // loop_header
      %s16 = sphi 0, %s20
      %p17 = scmp.ge.s32.totalorder %s16, 4
      %s23 = sphi 0, %s35
      %s24 = sphi 0, %s31
      %s25 = sphi 0, %s23
      %s26 = sphi 0, %s24
      %s27 = sphi 0, %s25
      %s28 = sphi 0, %s26
      %s38 = sphi 0, %s40
      %s41 = sphi 0, %s38
      %s42 = sphi 0, %s41
      %s58 = sphi 0, %s42
      %s64 = sphi 0, %s66
      %s67 = sphi 0, %s64
      %s68 = sphi 0, %s67
      %s84 = sphi 0, %s68
      %s90 = sphi 0, %s92
      %s93 = sphi 0, %s90
      %s94 = sphi 0, %s93
      %s110 = sphi 0, %s94
      %s118 = sphi 0, %s120
      %s121 = sphi 0, %s118
      %s122 = sphi 0, %s121
      %s138 = sphi 0, %s122
    $region4: #{tpu_custom_call.1} parent=1 // loop_header_branch
      %19 = sbr.rel (%p17) target = $region8
    $region5: #{tpu_custom_call.1} parent=1 // loop_body
      %s21 = ssub.s32 %s16, 1
      %s22 = ssub.s32 %s16, 2
      %s29 = sadd.s32 1, %s24
      %p30 = scmp.ge.s32.totalorder %s29, 2
      %s31 = scalar_select %p30, 0, %s29
      %s32 = sadd.s32 1, %s23
      %s33 = scalar_select %p30, %s32, %s23
      %p34 = scmp.ge.s32.totalorder %s33, 1
      %s35 = scalar_select %p34, 0, %s33
      %s36 = ssub.s32 %s24, %s31
      %p37 = scmp.eq.s32.totalorder %s36, 0
      %s39 = sadd.s32 %s38, 1
      %s40 = scalar_select %p37, %s38, %s39
      %p43 = pneg %p37
      %p44 = scmp.eq.s32.totalorder %s16, 1
      %p45 = por %p43, %p44
      %p46 = scmp.ne.s32.totalorder %s38, %s41
      %p47 = scmp.eq.s32.totalorder %s16, 0
      %p48 = por %p46, %p47
      %p49 = scmp.ne.s32.totalorder %s38, %s41
      %p50 = scmp.eq.s32.totalorder %s21, 1
      %p51 = por %p49, %p50
      %p52 = scmp.ne.s32.totalorder %s41, %s42
      %p53 = scmp.eq.s32.totalorder %s21, 0
      %p54 = por %p52, %p53
      %p55 = scmp.ne.s32.totalorder %s41, %s42
      %p56 = scmp.eq.s32.totalorder %s22, 1
      %p57 = por %p55, %p56
      %p59 = scmp.ne.s32.totalorder %s42, %s58
      %p60 = scmp.eq.s32.totalorder %s22, 0
      %p61 = por %p59, %p60
      %s62 = ssub.s32 %s23, %s35
      %p63 = scmp.eq.s32.totalorder %s62, 0
      %s65 = sadd.s32 %s64, 1
      %s66 = scalar_select %p63, %s64, %s65
      %p69 = pneg %p63
      %p70 = scmp.eq.s32.totalorder %s16, 1
      %p71 = por %p69, %p70
      %p72 = scmp.ne.s32.totalorder %s64, %s67
      %p73 = scmp.eq.s32.totalorder %s16, 0
      %p74 = por %p72, %p73
      %p75 = scmp.ne.s32.totalorder %s64, %s67
      %p76 = scmp.eq.s32.totalorder %s21, 1
      %p77 = por %p75, %p76
      %p78 = scmp.ne.s32.totalorder %s67, %s68
      %p79 = scmp.eq.s32.totalorder %s21, 0
      %p80 = por %p78, %p79
      %p81 = scmp.ne.s32.totalorder %s67, %s68
      %p82 = scmp.eq.s32.totalorder %s22, 1
      %p83 = por %p81, %p82
      %p85 = scmp.ne.s32.totalorder %s68, %s84
      %p86 = scmp.eq.s32.totalorder %s22, 0
      %p87 = por %p85, %p86
      %s88 = ssub.s32 %s23, %s35
      %p89 = scmp.eq.s32.totalorder %s88, 0
      %s91 = sadd.s32 %s90, 1
      %s92 = scalar_select %p89, %s90, %s91
      %p95 = pneg %p89
      %p96 = scmp.eq.s32.totalorder %s16, 1
      %p97 = por %p95, %p96
      %p98 = scmp.ne.s32.totalorder %s90, %s93
      %p99 = scmp.eq.s32.totalorder %s16, 0
      %p100 = por %p98, %p99
      %p101 = scmp.ne.s32.totalorder %s90, %s93
      %p102 = scmp.eq.s32.totalorder %s21, 1
      %p103 = por %p101, %p102
      %p104 = scmp.ne.s32.totalorder %s93, %s94
      %p105 = scmp.eq.s32.totalorder %s21, 0
      %p106 = por %p104, %p105
      %p107 = scmp.ne.s32.totalorder %s93, %s94
      %p108 = scmp.eq.s32.totalorder %s22, 1
      %p109 = por %p107, %p108
      %p111 = scmp.ne.s32.totalorder %s94, %s110
      %p112 = scmp.eq.s32.totalorder %s22, 0
      %p113 = por %p111, %p112
      %s114 = ssub.s32 %s24, %s31
      %s115 = ssub.s32 %s23, %s35
      %s116 = sor.u32 %s114, %s115
      %p117 = scmp.eq.s32.totalorder %s116, 0
      %s119 = sadd.s32 %s118, 1
      %s120 = scalar_select %p117, %s118, %s119
      %p123 = pneg %p117
      %p124 = scmp.eq.s32.totalorder %s16, 1
      %p125 = por %p123, %p124
      %p126 = scmp.ne.s32.totalorder %s118, %s121
      %p127 = scmp.eq.s32.totalorder %s16, 0
      %p128 = por %p126, %p127
      %p129 = scmp.ne.s32.totalorder %s118, %s121
      %p130 = scmp.eq.s32.totalorder %s21, 1
      %p131 = por %p129, %p130
      %p132 = scmp.ne.s32.totalorder %s121, %s122
      %p133 = scmp.eq.s32.totalorder %s21, 0
      %p134 = por %p132, %p133
      %p135 = scmp.ne.s32.totalorder %s121, %s122
      %p136 = scmp.eq.s32.totalorder %s22, 1
      %p137 = por %p135, %p136
      %p139 = scmp.ne.s32.totalorder %s122, %s138
      %p140 = scmp.eq.s32.totalorder %s22, 0
      %p141 = por %p139, %p140
      %p142 = scmp.le.s32.totalorder 1, %s16
      %p143 = scmp.lt.s32.totalorder %s16, 3
      %p144 = pnand %p142, %p143
      %p145 = pneg %p144
      // Predicated region
      $region9: #{tpu_custom_call.1} parent=5 // pred_check
        _
      $region10: #{tpu_custom_call.1} parent=5 // pred_check_branch
        %147 = sbr.rel (%p144) target = $region12
      $region11: #{tpu_custom_call.1} parent=5 // pred_region
        %s148 = ssub.s32 %s16, 1
        // Predicated region
        $region13: #{tpu_custom_call.1} parent=11 // pred_check
          %p149 = pneg %p80
        $region14: #{tpu_custom_call.1} parent=11 // pred_check_branch
          %151 = sbr.rel (%p149) target = $region16
        $region15: #{tpu_custom_call.1} parent=11 // pred_region
          %s153 = ssub.s32 2048, 2048
          %154 = vsyncadd [#allocation6], %s153
          %s155 = smul.addr %s25, 128
          %s156 = scalar_lea.hbm %s1, %s155
          %s157 = sshll.u32 [#allocation5], 4
          %s158 = int_to_ptr.vmem [resolvable:$true] %s157
          %163 = dma.hbm_to_vmem [thread:$0]  %s156, 2048, %s158, [#allocation6], 128, 128, 8
        $region16: #{tpu_custom_call.1} parent=11 // pred_fallthru
          _
        // Predicated region
        $region17: #{tpu_custom_call.1} parent=11 // pred_check
          %p164 = pneg %p106
        $region18: #{tpu_custom_call.1} parent=11 // pred_check_branch
          %166 = sbr.rel (%p164) target = $region20
        $region19: #{tpu_custom_call.1} parent=11 // pred_region
          %p167 = scmp.lt.s32.totalorder %s25, 0
          %s168 = scalar_select %p167, %s25, 0
          %s169 = scalar_lea.vmem %s2, %s168
        $region20: #{tpu_custom_call.1} parent=11 // pred_fallthru
          _
      $region12: #{tpu_custom_call.1} parent=5 // pred_fallthru
        _
      %p170 = scmp.lt.s32.totalorder %s16, 2
      // Predicated region
      $region21: #{tpu_custom_call.1} parent=5 // pred_check
        %p171 = pneg %p170
      $region22: #{tpu_custom_call.1} parent=5 // pred_check_branch
        %173 = sbr.rel (%p171) target = $region24
      $region23: #{tpu_custom_call.1} parent=5 // pred_region
        // Predicated region
        $region25: #{tpu_custom_call.1} parent=23 // pred_check
          %p174 = pneg %p48
        $region26: #{tpu_custom_call.1} parent=23 // pred_check_branch
          %176 = sbr.rel (%p174) target = $region28
        $region27: #{tpu_custom_call.1} parent=23 // pred_region
          %s177 = sand.u32 %s38, 1
          %s178 = scalar_lea.sflag [#allocation3], %s177
          %s179 = sand.u32 %s38, 1
          %s180 = smul.addr %s179, 16
          %s181 = scalar_lea.vmem [#allocation2], %s180
          %s182 = smul.u32 2, %s24
          %s184 = ssub.s32 256, 256
          %185 = vsyncadd %s178, %s184
          %s186 = smul.addr %s182, 128
          %s187 = scalar_lea.hbm %s0, %s186
          %s188 = sshll.u32 %s181, 4
          %s189 = int_to_ptr.vmem [resolvable:$true] %s188
          %194 = dma.hbm_to_vmem [thread:$0]  %s187, 256, %s189, %s178, 128, 128, 8
        $region28: #{tpu_custom_call.1} parent=23 // pred_fallthru
          _
      $region24: #{tpu_custom_call.1} parent=5 // pred_fallthru
        _
      %p195 = scmp.le.s32.totalorder 1, %s16
      %p196 = scmp.lt.s32.totalorder %s16, 3
      %p197 = pnand %p195, %p196
      %p198 = pneg %p197
      // Predicated region
      $region29: #{tpu_custom_call.1} parent=5 // pred_check
        _
      $region30: #{tpu_custom_call.1} parent=5 // pred_check_branch
        %200 = sbr.rel (%p197) target = $region32
      $region31: #{tpu_custom_call.1} parent=5 // pred_region
        %s201 = ssub.s32 %s16, 1
        %s202 = sand.u32 %s41, 1
        %s203 = scalar_lea.sflag [#allocation3], %s202
        %s204 = sand.u32 %s41, 1
        %s205 = smul.addr %s204, 16
        %s206 = scalar_lea.vmem [#allocation2], %s205
        // Predicated region
        $region33: #{tpu_custom_call.1} parent=31 // pred_check
          %p207 = pneg %p54
        $region34: #{tpu_custom_call.1} parent=31 // pred_check_branch
          %209 = sbr.rel (%p207) target = $region36
        $region35: #{tpu_custom_call.1} parent=31 // pred_region
          %210 = dma.done %s203, 256
        $region36: #{tpu_custom_call.1} parent=31 // pred_fallthru
          _
        // Predicated region
        $region37: #{tpu_custom_call.1} parent=31 // pred_check
          %p211 = pneg %p80
        $region38: #{tpu_custom_call.1} parent=31 // pred_check_branch
          %213 = sbr.rel (%p211) target = $region40
        $region39: #{tpu_custom_call.1} parent=31 // pred_region
          %214 = dma.done [#allocation6], 2048
        $region40: #{tpu_custom_call.1} parent=31 // pred_fallthru
          _
        %s215 = sand.u32 %s41, 1
        %s216 = scalar_lea.sflag [#allocation3], %s215
        %s217 = sand.u32 %s41, 1
        %s218 = smul.addr %s217, 16
        %s219 = scalar_lea.vmem [#allocation2], %s218
        %p220 = pneg %p54
        %p221 = pneg %p51
        %p222 = pneg %p80
        %p223 = pneg %p77
        %p224 = scmp.lt.s32.totalorder %s25, 0
        %s225 = scalar_select %p224, %s25, 0
        %s226 = scalar_lea.vmem %s2, %s225
        %p227 = pneg %p106
        %p228 = pneg %p103
        %p229 = pneg %p134
        %p230 = pneg %p131
        %s231 = sand.u32 %s121, 1
        %s232 = scalar_lea.sflag [#allocation4], %s231
        %s233 = sand.u32 %s121, 1
        %s234 = smul.addr %s233, 16
        %s235 = scalar_lea.vmem [#allocation7], %s234
        %s236 = smul.u32 2, %s26
        %p237 = scmp.lt.s32.totalorder %s25, 0
        %s238 = scalar_select %p237, %s25, 0
        %s239 = scalar_lea.vmem %s2, %s238
        %s240 = smul.u32 2, %s26
        %v241 = vld [vmem:[%s206] sm:$0xff]
        %v242 = vld [vmem:[%s206 + $0x8] sm:$0xff]
        %v243 = vld [vmem:[#allocation5] sm:$0xff]
        %v244 = vld [vmem:[#allocation5 + $0x8] sm:$0xff]
        %v245 = vld [vmem:[#allocation5 + $0x10] sm:$0xff]
        %v246 = vld [vmem:[#allocation5 + $0x18] sm:$0xff]
        %v247 = vld [vmem:[#allocation5 + $0x20] sm:$0xff]
        %v248 = vld [vmem:[#allocation5 + $0x28] sm:$0xff]
        %v249 = vld [vmem:[#allocation5 + $0x30] sm:$0xff]
        %v250 = vld [vmem:[#allocation5 + $0x38] sm:$0xff]
        %v251 = vld [vmem:[#allocation5 + $0x40] sm:$0xff]
        %v252 = vld [vmem:[#allocation5 + $0x48] sm:$0xff]
        %v253 = vld [vmem:[#allocation5 + $0x50] sm:$0xff]
        %v254 = vld [vmem:[#allocation5 + $0x58] sm:$0xff]
        %v255 = vld [vmem:[#allocation5 + $0x60] sm:$0xff]
        %v256 = vld [vmem:[#allocation5 + $0x68] sm:$0xff]
        %v257 = vld [vmem:[#allocation5 + $0x70] sm:$0xff]
        %v258 = vld [vmem:[#allocation5 + $0x78] sm:$0xff]
        %v259 = vld [vmem:[%s239] sm:$0x1]
        %v261 = vlaneseq
        %v262 = vshrl.u32 %v261, 7
        %v263 = vsub.s32 0, %v262
        %v264 = vrot.slane %v259, %v263
        %266 = vmatprep.subr.mxu0 0.0
        %267 = vmatpush1.msra.mxu0 %v243
        %268 = vmatprep.subr.mxu0 0.0
        %269 = vmatpush1.msra.mxu0 %v244
        %270 = vmatprep.subr.mxu0 0.0
        %271 = vmatpush1.msra.mxu0 %v245
        %272 = vmatprep.subr.mxu0 0.0
        %273 = vmatpush1.msra.mxu0 %v246
        %274 = vmatprep.subr.mxu0 0.0
        %275 = vmatpush1.msra.mxu0 %v247
        %276 = vmatprep.subr.mxu0 0.0
        %277 = vmatpush1.msra.mxu0 %v248
        %278 = vmatprep.subr.mxu0 0.0
        %279 = vmatpush1.msra.mxu0 %v249
        %280 = vmatprep.subr.mxu0 0.0
        %281 = vmatpush1.msra.mxu0 %v250
        %282 = vmatprep.subr.mxu0 0.0
        %283 = vmatpush1.msra.mxu0 %v251
        %284 = vmatprep.subr.mxu0 0.0
        %285 = vmatpush1.msra.mxu0 %v252
        %286 = vmatprep.subr.mxu0 0.0
        %287 = vmatpush1.msra.mxu0 %v253
        %288 = vmatprep.subr.mxu0 0.0
        %289 = vmatpush1.msra.mxu0 %v254
        %290 = vmatprep.subr.mxu0 0.0
        %291 = vmatpush1.msra.mxu0 %v255
        %292 = vmatprep.subr.mxu0 0.0
        %293 = vmatpush1.msra.mxu0 %v256
        %294 = vmatprep.subr.mxu0 0.0
        %295 = vmatpush1.msra.mxu0 %v257
        %296 = vmatprep.subr.mxu0 0.0
        %297 = vmatpush1.msra.mxu0 %v258
        %298 = vmatprep.subr.mxu0 0.0
        %299 = vmatpush1.msra.mxu0 0.0
        %300 = vmatprep.subr.mxu0 0.0
        %301 = vmatpush1.msra.mxu0 0.0
        %302 = vmatprep.subr.mxu0 0.0
        %303 = vmatpush1.msra.mxu0 0.0
        %304 = vmatprep.subr.mxu0 0.0
        %305 = vmatpush1.msra.mxu0 0.0
        %306 = vmatprep.subr.mxu0 0.0
        %307 = vmatpush1.msra.mxu0 0.0
        %308 = vmatprep.subr.mxu0 0.0
        %309 = vmatpush1.msra.mxu0 0.0
        %310 = vmatprep.subr.mxu0 0.0
        %311 = vmatpush1.msra.mxu0 0.0
        %312 = vmatprep.subr.mxu0 0.0
        %313 = vmatpush1.msra.mxu0 0.0
        %314 = vmatprep.subr.mxu0 0.0
        %315 = vmatpush1.msra.mxu0 0.0
        %316 = vmatprep.subr.mxu0 0.0
        %317 = vmatpush1.msra.mxu0 0.0
        %318 = vmatprep.subr.mxu0 0.0
        %319 = vmatpush1.msra.mxu0 0.0
        %320 = vmatprep.subr.mxu0 0.0
        %321 = vmatpush1.msra.mxu0 0.0
        %322 = vmatprep.subr.mxu0 0.0
        %323 = vmatpush1.msra.mxu0 0.0
        %324 = vmatprep.subr.mxu0 0.0
        %325 = vmatpush1.msra.mxu0 0.0
        %326 = vmatprep.subr.mxu0 0.0
        %327 = vmatpush1.msra.mxu0 0.0
        %328 = vmatprep.subr.mxu0 0.0
        %329 = vmatpush1.msra.mxu0 0.0
        %330 = vmatprep.mubr.f32.mxu0 0.0
        %331 = vmatmul.mubr.f32.gmra.mrb[0].mxu0 %v241
        %v332 = vpop.f32.mrb[0].mxu0
        %v333 = vadd.f32 %v264, %v332
        %v334 = vpop.f32.mrb[0].mxu0
        %335 = vmatprep.mubr.f32.mxu0 0.0
        %336 = vmatmul.mubr.f32.gmra.mrb[0].mxu0 %v242
        %v337 = vpop.f32.mrb[0].mxu0
        %v338 = vadd.f32 %v264, %v337
        %v339 = vpop.f32.mrb[0].mxu0
        %340 = vdwg.mxu0
        %341 = vst [vmem:[%s235] sm:$0xff] %v333
        %342 = vst [vmem:[%s235 + $0x8] sm:$0xff] %v338
        %s343 = sand.u32 %s121, 1
        %s344 = scalar_lea.sflag [#allocation4], %s343
        %s345 = sand.u32 %s121, 1
        %s346 = smul.addr %s345, 16
        %s347 = scalar_lea.vmem [#allocation7], %s346
        // Predicated region
        $region41: #{tpu_custom_call.1} parent=31 // pred_check
          %p348 = pneg %p131
        $region42: #{tpu_custom_call.1} parent=31 // pred_check_branch
          %350 = sbr.rel (%p348) target = $region44
        $region43: #{tpu_custom_call.1} parent=31 // pred_region
          %s351 = smul.u32 2, %s26
          %s353 = ssub.s32 256, 256
          %354 = vsyncadd %s344, %s353
          %s355 = sadd.s32 %s25, %s351
          %s356 = smul.addr %s355, 128
          %s357 = scalar_lea.hbm %s3, %s356
          %s358 = sshll.u32 %s347, 4
          %s359 = int_to_ptr.vmem [resolvable:$true] %s358
          %364 = dma.vmem_to_hbm [thread:$0]  %s359, 256, %s357, %s344, 128, 128, 8
        $region44: #{tpu_custom_call.1} parent=31 // pred_fallthru
          _
      $region32: #{tpu_custom_call.1} parent=5 // pred_fallthru
        _
      %p365 = scmp.le.s32.totalorder 2, %s16
      // Predicated region
      $region45: #{tpu_custom_call.1} parent=5 // pred_check
        %p366 = pneg %p365
      $region46: #{tpu_custom_call.1} parent=5 // pred_check_branch
        %368 = sbr.rel (%p366) target = $region48
      $region47: #{tpu_custom_call.1} parent=5 // pred_region
        %s369 = ssub.s32 %s16, 2
        // Predicated region
        $region49: #{tpu_custom_call.1} parent=47 // pred_check
          %p370 = pneg %p137
        $region50: #{tpu_custom_call.1} parent=47 // pred_check_branch
          %372 = sbr.rel (%p370) target = $region52
        $region51: #{tpu_custom_call.1} parent=47 // pred_region
          %s373 = sand.u32 %s122, 1
          %s374 = scalar_lea.sflag [#allocation4], %s373
          %s375 = sand.u32 %s122, 1
          %s376 = smul.addr %s375, 16
          %s377 = scalar_lea.vmem [#allocation7], %s376
          %378 = dma.done %s374, 256
        $region52: #{tpu_custom_call.1} parent=47 // pred_fallthru
          _
      $region48: #{tpu_custom_call.1} parent=5 // pred_fallthru
        _
    $region6: #{tpu_custom_call.1} parent=1 // loop_footer
      %s20 = sadd.s32 1, %s16
    $region7: #{tpu_custom_call.1} parent=1 // loop_footer_branch
      %15 = sbr.rel target = $region3
    $region8: #{tpu_custom_call.1} parent=1 // loop_exit
      _
    %379 = vsyncpa [#allocation3], 1
    %s380 = scalar_lea.sflag [#allocation3], 1
    %381 = vsyncpa %s380, 1
    %382 = vsyncpa [#allocation6], 1
    %383 = vsyncpa [#allocation4], 1
    %s384 = scalar_lea.sflag [#allocation4], 1
    %385 = vsyncpa %s384, 1

</llo_original>
